<compile_context>
chip_gen: v6e
topology: v6e:2x2x1
jax: 0.10.0
libtpu: 0.0.40
codegen_flags: <defaults>
</compile_context>

<pallas_src>
import functools

import jax
import jax.numpy as jnp
import numpy as np
from jax import lax
from jax.experimental import pallas as pl
from jax.experimental.pallas import tpu as pltpu

LN_EPS = 1e-5  # torch.nn.LayerNorm default


# ----------------------------------------------------------------------------
# shared in-kernel math
# ----------------------------------------------------------------------------
def _layernorm(v, w, b):
    # PyTorch LayerNorm: biased variance over the last axis.
    mu = jnp.mean(v, axis=-1, keepdims=True)
    var = jnp.mean((v - mu) ** 2, axis=-1, keepdims=True)
    return (v - mu) * jax.lax.rsqrt(var + LN_EPS) * w + b


def _gate_math(gates, cx, lnc_w, lnc_b, H, gate_dtype):
    # Gates laid out (i, f, o, g): one contiguous sigmoid over 3H columns and
    # one tanh over the trailing H columns.  gate_dtype=bf16 uses the v6e/v7x
    # bf16 EUP rate; the cell-state update and LN_c stay in f32.
    g_act = gates.astype(gate_dtype)
    sig = jax.nn.sigmoid(g_act[:, : 3 * H]).astype(jnp.float32)
    g = jnp.tanh(g_act[:, 3 * H:]).astype(jnp.float32)
    i = sig[:, 0:H]
    f = sig[:, H:2 * H]
    o = sig[:, 2 * H:3 * H]
    cy = _layernorm(f * cx + i * g, lnc_w, lnc_b)
    hy = o * jnp.tanh(cy)
    return hy, cy


# ----------------------------------------------------------------------------
# kernels
# ----------------------------------------------------------------------------
def _cell_kernel(x_ref, hx_ref, cx_ref, wih_ref, whh_ref,
                 lni_w_ref, lni_b_ref, lnh_w_ref, lnh_b_ref,
                 lnc_w_ref, lnc_b_ref,
                 hy_ref, cy_ref, *, gate_dtype):
    cdt = wih_ref.dtype                      # bf16 compute dtype (from params)
    x = x_ref[...].astype(cdt)
    hx = hx_ref[...].astype(cdt)
    cx = cx_ref[...].astype(jnp.float32)

    igates = _layernorm(
        jnp.dot(x, wih_ref[...], preferred_element_type=jnp.float32),
        lni_w_ref[...], lni_b_ref[...])
    hgates = _layernorm(
        jnp.dot(hx, whh_ref[...], preferred_element_type=jnp.float32),
        lnh_w_ref[...], lnh_b_ref[...])
    gates = igates + hgates

    H = cx_ref.shape[-1]
    hy, cy = _gate_math(gates, cx, lnc_w_ref[...], lnc_b_ref[...], H, gate_dtype)
    hy_ref[...] = hy.astype(hy_ref.dtype)
    cy_ref[...] = cy.astype(cy_ref.dtype)


def _input_proj_kernel(x_ref, wih_ref, lni_w_ref, lni_b_ref, out_ref):
    # LN_i(X_tile @ W_ih): one M-tile of the big all-timestep MXU matmul.
    ig = jnp.dot(x_ref[...].astype(wih_ref.dtype), wih_ref[...],
                 preferred_element_type=jnp.float32)
    out_ref[...] = _layernorm(ig, lni_w_ref[...], lni_b_ref[...]).astype(out_ref.dtype)


def _seq_kernel(ig_ref, whh_ref, lnh_w_ref, lnh_b_ref, lnc_w_ref, lnc_b_ref,
                h0_ref, c0_ref,
                hseq_ref, cfin_ref,
                h_scr, c_scr, *, gate_dtype):
    tch = pl.program_id(1)                     # time-chunk index (inner axis)

    @pl.when(tch == 0)
    def _():
        h_scr[...] = h0_ref[...].astype(h_scr.dtype)     # bf16 carry
        c_scr[...] = c0_ref[...].astype(jnp.float32)     # f32 carry

    # Resident operands: read once per grid step, reused by every inner step.
    whh = whh_ref[...]
    lnh_w = lnh_w_ref[...]
    lnh_b = lnh_b_ref[...]
    lnc_w = lnc_w_ref[...]
    lnc_b = lnc_b_ref[...]
    H = c_scr.shape[-1]
    TC = ig_ref.shape[0]

    def step(tc, carry):
        h = h_scr[...]                           # bf16 -> straight into the MXU
        c = c_scr[...]
        hgates = _layernorm(
            jnp.dot(h, whh, preferred_element_type=jnp.float32),
            lnh_w, lnh_b)
        gates = ig_ref[tc].astype(jnp.float32) + hgates   # ig stream is bf16
        hy, cy = _gate_math(gates, c, lnc_w, lnc_b, H, gate_dtype)
        h_scr[...] = hy.astype(h_scr.dtype)
        c_scr[...] = cy
        hseq_ref[tc] = hy.astype(hseq_ref.dtype)
        return carry

    lax.fori_loop(0, TC, step, 0, unroll=True)   # amortize grid-step overhead

    @pl.when(tch == pl.num_programs(1) - 1)
    def _():
        cfin_ref[...] = c_scr[...].astype(cfin_ref.dtype)


# ----------------------------------------------------------------------------
# VMEM budgeting (per-block footprints, clamped to device capacity)
# ----------------------------------------------------------------------------
def _device_vmem_capacity_bytes():
    try:
        return int(pltpu.get_tpu_info().vmem_capacity_bytes)
    except Exception:
        return 64 << 20          # conservative: v7x per-TensorCore VMEM


def _nbytes(shape, dtype):
    return int(np.prod(shape, dtype=np.int64)) * np.dtype(dtype).itemsize


def _vmem_limit_bytes(block_bytes):
    cap = _device_vmem_capacity_bytes()
    need = 2 * block_bytes + (8 << 20)           # margin for compiler internals
    return int(min(max(need, 32 << 20), int(cap * 0.85)))


def _largest_divisor_leq(n, bound):
    d = max(1, min(n, bound))
    while n % d:
        d -= 1
    return d


def auto_gate_dtype():
    """bf16 EUP transcendentals on v6e/v7x (~2x rate); f32 elsewhere."""
    try:
        kind = jax.devices()[0].device_kind.lower()
    except Exception:
        return jnp.float32
    return jnp.bfloat16 if ("v6" in kind or "v7" in kind) else jnp.float32


# ----------------------------------------------------------------------------
# wrappers
# ----------------------------------------------------------------------------
def layer_norm_lstm_cell(x, hx, cx, kparams, *, gate_dtype=jnp.float32):
    """Single LayerNormLSTMCell step. Returns (hy, (hy, cy)) like the module."""
    B, H = hx.shape
    vmem = pl.BlockSpec(memory_space=pltpu.MemorySpace.VMEM)
    args = (x, hx, cx, kparams["wih_t"], kparams["whh_t"],
            kparams["ln_i_w"], kparams["ln_i_b"],
            kparams["ln_h_w"], kparams["ln_h_b"],
            kparams["ln_c_w"], kparams["ln_c_b"])
    block_bytes = (sum(_nbytes(a.shape, a.dtype) for a in args)
                   + 2 * _nbytes((B, H), x.dtype))
    hy, cy = pl.pallas_call(
        functools.partial(_cell_kernel, gate_dtype=gate_dtype),
        out_shape=(jax.ShapeDtypeStruct((B, H), x.dtype),
                   jax.ShapeDtypeStruct((B, H), x.dtype)),
        in_specs=[vmem] * len(args),
        out_specs=(vmem, vmem),
        compiler_params=pltpu.CompilerParams(
            vmem_limit_bytes=_vmem_limit_bytes(block_bytes)),
    )(*args)
    return hy, (hy, cy)


def layer_norm_lstm_sequence(xs, h0, c0, kparams, *,
                             gate_dtype=jnp.float32,
                             time_chunk=8,
                             batch_block=None,
                             m_block=512):
    """Apply the cell over xs[t], t=0..T-1.

    Stage 1: tiled big-M input projection LN_i(X @ W_ih) -> bf16 igates stream.
    Stage 2: recurrence with grid=(batch_blocks, time_chunks); W_hh / LN params
    resident in VMEM, h (bf16) / c (f32) carried in VMEM scratch.
    """
    T, B, I = xs.shape
    H = h0.shape[-1]
    G = 4 * H
    cdt = kparams["wih_t"].dtype                 # bf16 compute dtype

    # --- 1) all-timestep input projection, tiled over M = T*B ---------------
    TB = T * B
    TM = min(m_block, TB)
    grid_m = pl.cdiv(TB, TM)
    proj_block_bytes = (2 * _nbytes((TM, I), xs.dtype)
                        + 2 * _nbytes((I, G), cdt)
                        + 4 * _nbytes((1, G), jnp.float32)
                        + 2 * _nbytes((TM, G), cdt))
    ig_all = pl.pallas_call(
        _input_proj_kernel,
        grid=(grid_m,),
        out_shape=jax.ShapeDtypeStruct((TB, G), cdt),       # bf16 igates stream
        in_specs=[pl.BlockSpec((TM, I), lambda m: (m, 0)),   # X tile (pipelined)
                  pl.BlockSpec((I, G), lambda m: (0, 0)),    # W_ih^T (resident)
                  pl.BlockSpec((1, G), lambda m: (0, 0)),    # ln_i gamma
                  pl.BlockSpec((1, G), lambda m: (0, 0))],   # ln_i beta
        out_specs=pl.BlockSpec((TM, G), lambda m: (m, 0)),
        compiler_params=pltpu.CompilerParams(
            dimension_semantics=("parallel",),               # v7x: 2 TC split
            vmem_limit_bytes=_vmem_limit_bytes(proj_block_bytes)),
    )(xs.reshape(TB, I), kparams["wih_t"],
      kparams["ln_i_w"], kparams["ln_i_b"]).reshape(T, B, G)

    # --- 2) recurrence: grid=(batch blocks, time chunks) ---------------------
    TC = _largest_divisor_leq(T, time_chunk)
    if batch_block is None:
        BB = B
    else:
        BB = batch_block
        assert B % BB == 0 and (BB % 8 == 0 or BB == B), \
            "batch_block must divide B and be a multiple of 8 (or equal B)"
    nb, nt = B // BB, T // TC

    seq_block_bytes = (2 * _nbytes((TC, BB, G), cdt)            # ig chunk (2x buf)
                       + 2 * _nbytes((H, G), cdt)               # W_hh^T
                       + 4 * _nbytes((1, G), jnp.float32)
                       + 4 * _nbytes((1, H), jnp.float32)
                       + 4 * _nbytes((BB, H), h0.dtype)         # h0, c0
                       + 2 * _nbytes((TC, BB, H), xs.dtype)     # hseq out
                       + 2 * _nbytes((BB, H), xs.dtype)         # cfin out
                       + _nbytes((BB, H), cdt)                  # h scratch (bf16)
                       + _nbytes((BB, H), jnp.float32))         # c scratch (f32)

    hy_seq, c_fin = pl.pallas_call(
        functools.partial(_seq_kernel, gate_dtype=gate_dtype),
        grid=(nb, nt),
        out_shape=(jax.ShapeDtypeStruct((T, B, H), xs.dtype),
                   jax.ShapeDtypeStruct((B, H), xs.dtype)),
        in_specs=[
            pl.BlockSpec((TC, BB, G), lambda b, t: (t, b, 0)),  # igates chunk
            pl.BlockSpec((H, G), lambda b, t: (0, 0)),          # W_hh^T (resident)
            pl.BlockSpec((1, G), lambda b, t: (0, 0)),          # ln_h gamma
            pl.BlockSpec((1, G), lambda b, t: (0, 0)),          # ln_h beta
            pl.BlockSpec((1, H), lambda b, t: (0, 0)),          # ln_c gamma
            pl.BlockSpec((1, H), lambda b, t: (0, 0)),          # ln_c beta
            pl.BlockSpec((BB, H), lambda b, t: (b, 0)),         # h0 block
            pl.BlockSpec((BB, H), lambda b, t: (b, 0)),         # c0 block
        ],
        out_specs=(pl.BlockSpec((TC, BB, H), lambda b, t: (t, b, 0)),  # h sequence
                   pl.BlockSpec((BB, H), lambda b, t: (b, 0))),        # final c
        scratch_shapes=[pltpu.VMEM((BB, H), cdt),          # carried h (bf16)
                        pltpu.VMEM((BB, H), jnp.float32)], # carried c (f32)
        compiler_params=pltpu.CompilerParams(
            dimension_semantics=("parallel", "arbitrary"),  # batch || , time serial
            vmem_limit_bytes=_vmem_limit_bytes(seq_block_bytes)),
    )(ig_all, kparams["whh_t"],
      kparams["ln_h_w"], kparams["ln_h_b"],
      kparams["ln_c_w"], kparams["ln_c_b"], h0, c0)

    return hy_seq, (hy_seq[-1], c_fin)       # final h == last sequence step


# ----------------------------------------------------------------------------
# one-time parameter preparation (offline: transpose + gate-permute + bf16)
# ----------------------------------------------------------------------------
def prepare_params(params, compute_dtype=jnp.bfloat16):
    G = params["ln_i_w"].shape[0]
    H = G // 4
    # PyTorch chunk order is (i, f, g, o); reorder columns to (i, f, o, g).
    perm = jnp.concatenate([jnp.arange(0, 2 * H),
                            jnp.arange(3 * H, 4 * H),
                            jnp.arange(2 * H, 3 * H)])
    row = lambda v: v.reshape(1, -1)
    return {
        "wih_t": params["weight_ih"][perm].T.astype(compute_dtype),  # (I, 4H)
        "whh_t": params["weight_hh"][perm].T.astype(compute_dtype),  # (H, 4H)
        "ln_i_w": row(params["ln_i_w"][perm]),
        "ln_i_b": row(params["ln_i_b"][perm]),
        "ln_h_w": row(params["ln_h_w"][perm]),
        "ln_h_b": row(params["ln_h_b"][perm]),
        "ln_c_w": row(params["ln_c_w"]),
        "ln_c_b": row(params["ln_c_b"]),
    }


# ----------------------------------------------------------------------------
# pure-JAX references (mirror the PyTorch module, gate order i, f, g, o)
# ----------------------------------------------------------------------------
def reference_cell(x, hx, cx, params, matmul_dtype=jnp.float32,
                   gate_dtype=jnp.float32, ig_store_dtype=None):
    def mm(a, w):
        return jnp.dot(a.astype(matmul_dtype), w.T.astype(matmul_dtype),
                       preferred_element_type=jnp.float32)
    igates = _layernorm(mm(x, params["weight_ih"]), params["ln_i_w"], params["ln_i_b"])
    if ig_store_dtype is not None:           # mirror the bf16 igates stream
        igates = igates.astype(ig_store_dtype).astype(jnp.float32)
    hgates = _layernorm(mm(hx, params["weight_hh"]), params["ln_h_w"], params["ln_h_b"])
    gates = (igates + hgates).astype(gate_dtype)
    H = hx.shape[-1]
    i = jax.nn.sigmoid(gates[:, 0:H]).astype(jnp.float32)
    f = jax.nn.sigmoid(gates[:, H:2 * H]).astype(jnp.float32)
    g = jnp.tanh(gates[:, 2 * H:3 * H]).astype(jnp.float32)
    o = jax.nn.sigmoid(gates[:, 3 * H:4 * H]).astype(jnp.float32)
    cy = _layernorm(f * cx + i * g, params["ln_c_w"], params["ln_c_b"])
    hy = o * jnp.tanh(cy)
    return hy, cy


def reference_sequence(xs, h0, c0, params, matmul_dtype=jnp.float32,
                       gate_dtype=jnp.float32, ig_store_dtype=None):
    h, c = h0, c0
    hs = []
    for t in range(xs.shape[0]):
        h, c = reference_cell(xs[t], h, c, params, matmul_dtype,
                              gate_dtype, ig_store_dtype)
        hs.append(h)
    return jnp.stack(hs, axis=0), (h, c)


def init_params(key, input_size, hidden_size):
    G = 4 * hidden_size
    ks = jax.random.split(key, 8)
    return {
        "weight_ih": jax.random.normal(ks[0], (G, input_size), jnp.float32),
        "weight_hh": jax.random.normal(ks[1], (G, hidden_size), jnp.float32),
        # perturb LN params so the gate-permute path is actually exercised.
        "ln_i_w": 1.0 + 0.1 * jax.random.normal(ks[2], (G,), jnp.float32),
        "ln_i_b": 0.1 * jax.random.normal(ks[3], (G,), jnp.float32),
        "ln_h_w": 1.0 + 0.1 * jax.random.normal(ks[4], (G,), jnp.float32),
        "ln_h_b": 0.1 * jax.random.normal(ks[5], (G,), jnp.float32),
        "ln_c_w": 1.0 + 0.1 * jax.random.normal(ks[6], (hidden_size,), jnp.float32),
        "ln_c_b": 0.1 * jax.random.normal(ks[7], (hidden_size,), jnp.float32),
    }


if __name__ == "__main__":
    # Toy shapes (see header note about real sizes: H, I multiples of 128,
    # B >= 128 to fill the MXU).  B=16 / batch_block=8 and T=8 / time_chunk=4
    # deliberately exercise the (2 batch blocks) x (2 time chunks) grid.
    B, INPUT, HIDDEN, T = 16, 32, 32, 8

    key = jax.random.PRNGKey(0)
    kp, kx, kh, kc, ks = jax.random.split(key, 5)
    params = init_params(kp, INPUT, HIDDEN)
    kparams = prepare_params(params)          # one-time prep (transpose/permute/bf16)

    x = jax.random.normal(kx, (B, INPUT), jnp.float32)
    hx = jax.random.normal(kh, (B, HIDDEN), jnp.float32)
    cx = jax.random.normal(kc, (B, HIDDEN), jnp.float32)
    xs = jax.random.normal(ks, (T, B, INPUT), jnp.float32)

    # --- single-step cell (matches the module forward exactly) --------------
    cell = jax.jit(layer_norm_lstm_cell)
    hy, (hy2, cy) = cell(x, hx, cx, kparams)
    jax.block_until_ready((hy, cy))

    hy_m, cy_m = reference_cell(x, hx, cx, params, matmul_dtype=jnp.bfloat16)
    assert jnp.allclose(hy, hy_m, atol=5e-3, rtol=5e-3), "hy mismatch (matched ref)"
    assert jnp.allclose(cy, cy_m, atol=5e-3, rtol=5e-3), "cy mismatch (matched ref)"
    hy_f, cy_f = reference_cell(x, hx, cx, params)        # exact f32 module math
    assert jnp.allclose(hy, hy_f, atol=1e-1, rtol=1e-1), "hy mismatch (f32 ref)"
    assert jnp.allclose(cy, cy_f, atol=1e-1, rtol=1e-1), "cy mismatch (f32 ref)"

    # --- recurrent sequence (2 batch blocks x 2 time chunks) ----------------
    seq = jax.jit(functools.partial(layer_norm_lstm_sequence,
                                    time_chunk=4, batch_block=8))
    hy_seq, (h_fin, c_fin) = seq(xs, hx, cx, kparams)
    jax.block_until_ready((hy_seq, h_fin, c_fin))

    hy_seq_m, (hf_m, cf_m) = reference_sequence(
        xs, hx, cx, params, matmul_dtype=jnp.bfloat16, ig_store_dtype=jnp.bfloat16)
    assert jnp.allclose(hy_seq, hy_seq_m, atol=1e-2, rtol=1e-2), "hy_seq mismatch"
    assert jnp.allclose(h_fin, hf_m, atol=1e-2, rtol=1e-2), "final h mismatch"
    assert jnp.allclose(c_fin, cf_m, atol=1e-2, rtol=1e-2), "final c mismatch"

    # --- bf16-EUP gate path (v6e/v7x only): prove it compiles & runs --------
    gdt = auto_gate_dtype()
    if gdt != jnp.float32:
        seq_bf = jax.jit(functools.partial(layer_norm_lstm_sequence,
                                           time_chunk=4, batch_block=8,
                                           gate_dtype=gdt))
        hy_seq_b, (h_fin_b, c_fin_b) = seq_bf(xs, hx, cx, kparams)
        jax.block_until_ready((hy_seq_b, h_fin_b, c_fin_b))
        assert bool(jnp.all(jnp.isfinite(hy_seq_b))), "bf16-gate path non-finite"
        assert float(jnp.max(jnp.abs(hy_seq_b - hy_seq))) < 2e-1, \
            "bf16-gate path diverged from f32-gate path"

    print("KERNEL_OK")
</pallas_src>

<mosaic_0001>
module attributes {stable_mosaic.version = 11 : i64} {
  func.func @_cell_kernel(%arg0: memref<16x32xf32, #tpu.memory_space<vmem>>, %arg1: memref<16x32xf32, #tpu.memory_space<vmem>>, %arg2: memref<16x32xf32, #tpu.memory_space<vmem>>, %arg3: memref<32x128xbf16, #tpu.memory_space<vmem>>, %arg4: memref<32x128xbf16, #tpu.memory_space<vmem>>, %arg5: memref<1x128xf32, #tpu.memory_space<vmem>>, %arg6: memref<1x128xf32, #tpu.memory_space<vmem>>, %arg7: memref<1x128xf32, #tpu.memory_space<vmem>>, %arg8: memref<1x128xf32, #tpu.memory_space<vmem>>, %arg9: memref<1x32xf32, #tpu.memory_space<vmem>>, %arg10: memref<1x32xf32, #tpu.memory_space<vmem>>, %arg11: memref<16x32xf32, #tpu.memory_space<vmem>>, %arg12: memref<16x32xf32, #tpu.memory_space<vmem>>) attributes {dimension_semantics = [], scalar_prefetch = 0 : i64, scratch_operands = 0 : i64, tpu.core_type = #tpu.core_type<tc>} {
    %c0 = arith.constant 0 : index
    %c0_0 = arith.constant 0 : index
    %0 = vector.load %arg0[%c0, %c0_0] : memref<16x32xf32, #tpu.memory_space<vmem>>, vector<16x32xf32>
    %1 = arith.truncf %0 : vector<16x32xf32> to vector<16x32xbf16>
    %c0_1 = arith.constant 0 : index
    %c0_2 = arith.constant 0 : index
    %2 = vector.load %arg1[%c0_1, %c0_2] : memref<16x32xf32, #tpu.memory_space<vmem>>, vector<16x32xf32>
    %3 = arith.truncf %2 : vector<16x32xf32> to vector<16x32xbf16>
    %c0_3 = arith.constant 0 : index
    %c0_4 = arith.constant 0 : index
    %4 = vector.load %arg2[%c0_3, %c0_4] : memref<16x32xf32, #tpu.memory_space<vmem>>, vector<16x32xf32>
    %c0_5 = arith.constant 0 : index
    %c0_6 = arith.constant 0 : index
    %5 = vector.load %arg3[%c0_5, %c0_6] : memref<32x128xbf16, #tpu.memory_space<vmem>>, vector<32x128xbf16>
    %cst = arith.constant dense<0.000000e+00> : vector<16x128xf32>
    %6 = tpu.matmul %1, %5, %cst {dimension_numbers = #tpu.dot_dimension_numbers<[1], [0], [0], [1], [0, 0, 1, 1], [], []>} : vector<16x32xbf16>, vector<32x128xbf16>, vector<16x128xf32> -> vector<16x128xf32>
    %c0_7 = arith.constant 0 : index
    %c0_8 = arith.constant 0 : index
    %7 = vector.load %arg5[%c0_7, %c0_8] : memref<1x128xf32, #tpu.memory_space<vmem>>, vector<1x128xf32>
    %c0_9 = arith.constant 0 : index
    %c0_10 = arith.constant 0 : index
    %8 = vector.load %arg6[%c0_9, %c0_10] : memref<1x128xf32, #tpu.memory_space<vmem>>, vector<1x128xf32>
    %cst_11 = arith.constant dense<0.000000e+00> : vector<16xf32>
    %9 = vector.multi_reduction <add>, %6, %cst_11 [1] : vector<16x128xf32> to vector<16xf32>
    %10 = vector.shape_cast %9 : vector<16xf32> to vector<16x1xf32>
    %cst_12 = arith.constant 1.280000e+02 : f32
    %11 = vector.broadcast %cst_12 : f32 to vector<16x1xf32>
    %12 = arith.divf %10, %11 : vector<16x1xf32>
    %13 = vector.broadcast %12 : vector<16x1xf32> to vector<16x128xf32>
    %14 = arith.subf %6, %13 : vector<16x128xf32>
    %15 = arith.mulf %14, %14 : vector<16x128xf32>
    %cst_13 = arith.constant dense<0.000000e+00> : vector<16xf32>
    %16 = vector.multi_reduction <add>, %15, %cst_13 [1] : vector<16x128xf32> to vector<16xf32>
    %17 = vector.shape_cast %16 : vector<16xf32> to vector<16x1xf32>
    %cst_14 = arith.constant 1.280000e+02 : f32
    %18 = vector.broadcast %cst_14 : f32 to vector<16x1xf32>
    %19 = arith.divf %17, %18 : vector<16x1xf32>
    %20 = vector.broadcast %12 : vector<16x1xf32> to vector<16x128xf32>
    %21 = arith.subf %6, %20 : vector<16x128xf32>
    %cst_15 = arith.constant 9.99999974E-6 : f32
    %22 = vector.broadcast %cst_15 : f32 to vector<16x1xf32>
    %23 = arith.addf %19, %22 : vector<16x1xf32>
    %24 = math.rsqrt %23 : vector<16x1xf32>
    %25 = vector.broadcast %24 : vector<16x1xf32> to vector<16x128xf32>
    %26 = arith.mulf %21, %25 : vector<16x128xf32>
    %27 = vector.broadcast %7 : vector<1x128xf32> to vector<16x128xf32>
    %28 = arith.mulf %26, %27 : vector<16x128xf32>
    %29 = vector.broadcast %8 : vector<1x128xf32> to vector<16x128xf32>
    %30 = arith.addf %28, %29 : vector<16x128xf32>
    %c0_16 = arith.constant 0 : index
    %c0_17 = arith.constant 0 : index
    %31 = vector.load %arg4[%c0_16, %c0_17] : memref<32x128xbf16, #tpu.memory_space<vmem>>, vector<32x128xbf16>
    %cst_18 = arith.constant dense<0.000000e+00> : vector<16x128xf32>
    %32 = tpu.matmul %3, %31, %cst_18 {dimension_numbers = #tpu.dot_dimension_numbers<[1], [0], [0], [1], [0, 0, 1, 1], [], []>} : vector<16x32xbf16>, vector<32x128xbf16>, vector<16x128xf32> -> vector<16x128xf32>
    %c0_19 = arith.constant 0 : index
    %c0_20 = arith.constant 0 : index
    %33 = vector.load %arg7[%c0_19, %c0_20] : memref<1x128xf32, #tpu.memory_space<vmem>>, vector<1x128xf32>
    %c0_21 = arith.constant 0 : index
    %c0_22 = arith.constant 0 : index
    %34 = vector.load %arg8[%c0_21, %c0_22] : memref<1x128xf32, #tpu.memory_space<vmem>>, vector<1x128xf32>
    %cst_23 = arith.constant dense<0.000000e+00> : vector<16xf32>
    %35 = vector.multi_reduction <add>, %32, %cst_23 [1] : vector<16x128xf32> to vector<16xf32>
    %36 = vector.shape_cast %35 : vector<16xf32> to vector<16x1xf32>
    %cst_24 = arith.constant 1.280000e+02 : f32
    %37 = vector.broadcast %cst_24 : f32 to vector<16x1xf32>
    %38 = arith.divf %36, %37 : vector<16x1xf32>
    %39 = vector.broadcast %38 : vector<16x1xf32> to vector<16x128xf32>
    %40 = arith.subf %32, %39 : vector<16x128xf32>
    %41 = arith.mulf %40, %40 : vector<16x128xf32>
    %cst_25 = arith.constant dense<0.000000e+00> : vector<16xf32>
    %42 = vector.multi_reduction <add>, %41, %cst_25 [1] : vector<16x128xf32> to vector<16xf32>
    %43 = vector.shape_cast %42 : vector<16xf32> to vector<16x1xf32>
    %cst_26 = arith.constant 1.280000e+02 : f32
    %44 = vector.broadcast %cst_26 : f32 to vector<16x1xf32>
    %45 = arith.divf %43, %44 : vector<16x1xf32>
    %46 = vector.broadcast %38 : vector<16x1xf32> to vector<16x128xf32>
    %47 = arith.subf %32, %46 : vector<16x128xf32>
    %cst_27 = arith.constant 9.99999974E-6 : f32
    %48 = vector.broadcast %cst_27 : f32 to vector<16x1xf32>
    %49 = arith.addf %45, %48 : vector<16x1xf32>
    %50 = math.rsqrt %49 : vector<16x1xf32>
    %51 = vector.broadcast %50 : vector<16x1xf32> to vector<16x128xf32>
    %52 = arith.mulf %47, %51 : vector<16x128xf32>
    %53 = vector.broadcast %33 : vector<1x128xf32> to vector<16x128xf32>
    %54 = arith.mulf %52, %53 : vector<16x128xf32>
    %55 = vector.broadcast %34 : vector<1x128xf32> to vector<16x128xf32>
    %56 = arith.addf %54, %55 : vector<16x128xf32>
    %57 = arith.addf %30, %56 : vector<16x128xf32>
    %c0_28 = arith.constant 0 : index
    %c0_29 = arith.constant 0 : index
    %58 = vector.load %arg9[%c0_28, %c0_29] : memref<1x32xf32, #tpu.memory_space<vmem>>, vector<1x32xf32>
    %c0_30 = arith.constant 0 : index
    %c0_31 = arith.constant 0 : index
    %59 = vector.load %arg10[%c0_30, %c0_31] : memref<1x32xf32, #tpu.memory_space<vmem>>, vector<1x32xf32>
    %60 = vector.extract_strided_slice %57 {offsets = [0, 0], sizes = [16, 96], strides = [1, 1]} : vector<16x128xf32> to vector<16x96xf32>
    %61 = arith.negf %60 : vector<16x96xf32>
    %62 = math.exp %61 : vector<16x96xf32>
    %cst_32 = arith.constant 1.000000e+00 : f32
    %63 = vector.broadcast %cst_32 : f32 to vector<16x96xf32>
    %64 = arith.addf %63, %62 : vector<16x96xf32>
    %65 = arith.divf %63, %64 : vector<16x96xf32>
    %66 = vector.extract_strided_slice %57 {offsets = [0, 96], sizes = [16, 32], strides = [1, 1]} : vector<16x128xf32> to vector<16x32xf32>
    %67 = math.tanh %66 : vector<16x32xf32>
    %68 = vector.extract_strided_slice %65 {offsets = [0, 0], sizes = [16, 32], strides = [1, 1]} : vector<16x96xf32> to vector<16x32xf32>
    %69 = vector.extract_strided_slice %65 {offsets = [0, 32], sizes = [16, 32], strides = [1, 1]} : vector<16x96xf32> to vector<16x32xf32>
    %70 = vector.extract_strided_slice %65 {offsets = [0, 64], sizes = [16, 32], strides = [1, 1]} : vector<16x96xf32> to vector<16x32xf32>
    %71 = arith.mulf %69, %4 : vector<16x32xf32>
    %72 = arith.mulf %68, %67 : vector<16x32xf32>
    %73 = arith.addf %71, %72 : vector<16x32xf32>
    %cst_33 = arith.constant dense<0.000000e+00> : vector<16xf32>
    %74 = vector.multi_reduction <add>, %73, %cst_33 [1] : vector<16x32xf32> to vector<16xf32>
    %75 = vector.shape_cast %74 : vector<16xf32> to vector<16x1xf32>
    %cst_34 = arith.constant 3.200000e+01 : f32
    %76 = vector.broadcast %cst_34 : f32 to vector<16x1xf32>
    %77 = arith.divf %75, %76 : vector<16x1xf32>
    %78 = vector.broadcast %77 : vector<16x1xf32> to vector<16x32xf32>
    %79 = arith.subf %73, %78 : vector<16x32xf32>
    %80 = arith.mulf %79, %79 : vector<16x32xf32>
    %cst_35 = arith.constant dense<0.000000e+00> : vector<16xf32>
    %81 = vector.multi_reduction <add>, %80, %cst_35 [1] : vector<16x32xf32> to vector<16xf32>
    %82 = vector.shape_cast %81 : vector<16xf32> to vector<16x1xf32>
    %cst_36 = arith.constant 3.200000e+01 : f32
    %83 = vector.broadcast %cst_36 : f32 to vector<16x1xf32>
    %84 = arith.divf %82, %83 : vector<16x1xf32>
    %85 = vector.broadcast %77 : vector<16x1xf32> to vector<16x32xf32>
    %86 = arith.subf %73, %85 : vector<16x32xf32>
    %cst_37 = arith.constant 9.99999974E-6 : f32
    %87 = vector.broadcast %cst_37 : f32 to vector<16x1xf32>
    %88 = arith.addf %84, %87 : vector<16x1xf32>
    %89 = math.rsqrt %88 : vector<16x1xf32>
    %90 = vector.broadcast %89 : vector<16x1xf32> to vector<16x32xf32>
    %91 = arith.mulf %86, %90 : vector<16x32xf32>
    %92 = vector.broadcast %58 : vector<1x32xf32> to vector<16x32xf32>
    %93 = arith.mulf %91, %92 : vector<16x32xf32>
    %94 = vector.broadcast %59 : vector<1x32xf32> to vector<16x32xf32>
    %95 = arith.addf %93, %94 : vector<16x32xf32>
    %96 = math.tanh %95 : vector<16x32xf32>
    %97 = arith.mulf %70, %96 : vector<16x32xf32>
    %c0_38 = arith.constant 0 : index
    %c0_39 = arith.constant 0 : index
    %98 = vector.load %arg11[%c0_38, %c0_39] : memref<16x32xf32, #tpu.memory_space<vmem>>, vector<16x32xf32>
    tpu.vector_store %arg11[%c0_38, %c0_39], %97 {strides = array<i32>} : memref<16x32xf32, #tpu.memory_space<vmem>>, vector<16x32xf32>,
    %c0_40 = arith.constant 0 : index
    %c0_41 = arith.constant 0 : index
    %99 = vector.load %arg12[%c0_40, %c0_41] : memref<16x32xf32, #tpu.memory_space<vmem>>, vector<16x32xf32>
    tpu.vector_store %arg12[%c0_40, %c0_41], %95 {strides = array<i32>} : memref<16x32xf32, #tpu.memory_space<vmem>>, vector<16x32xf32>,
    return
  }
}

</mosaic_0001>

<llo_original>
// kernel: layer_norm_lstm_cell.1
$region0: #{layer_norm_lstm_cell.1}
  #allocation0 [shape = 'u32[]', space=smem, size = 0x4, offset = 0x4, fixed_abs, tag = 'smem constant byte address 0x4 - core index']
  #allocation1 [shape = 'u32[144,128]{1,0:T(1,128)}', space=vmem, size = 0x12000, scoped, tag = 'internal scratch']
  %s0 = inlined_call_operand.hbm [shape: f32[16,32], index: 0, kind: input, shape index: {}]
  %s1 = inlined_call_operand.hbm [shape: f32[16,32], index: 1, kind: input, shape index: {}]
  %s2 = inlined_call_operand.hbm [shape: f32[16,32], index: 2, kind: input, shape index: {}]
  %s3 = inlined_call_operand.vmem [shape: bf16[32,128], index: 3, kind: input, shape index: {}]
  %s4 = inlined_call_operand.hbm [shape: bf16[32,128], index: 4, kind: input, shape index: {}]
  %s5 = inlined_call_operand.vmem [shape: f32[1,128], index: 5, kind: input, shape index: {}]
  %s6 = inlined_call_operand.vmem [shape: f32[1,128], index: 6, kind: input, shape index: {}]
  %s7 = inlined_call_operand.hbm [shape: f32[1,128], index: 7, kind: input, shape index: {}]
  %s8 = inlined_call_operand.hbm [shape: f32[1,128], index: 8, kind: input, shape index: {}]
  %s9 = inlined_call_operand.hbm [shape: f32[1,32], index: 9, kind: input, shape index: {}]
  %s10 = inlined_call_operand.hbm [shape: f32[1,32], index: 10, kind: input, shape index: {}]
  %s11 = inlined_call_operand.vmem [shape: f32[16,32], index: 11, kind: output, shape index: {0}]
  %s12 = inlined_call_operand.hbm [shape: f32[16,32], index: 12, kind: output, shape index: {1}]
  %13 = xla_tuple %s11, %s12
  %s14 = sld [smem:[#allocation0]]
  $region94: #{layer_norm_lstm_cell.1} parent=0
    _
  %s16 = ssub.s32 1, %s14
  %s17 = scalar_select 0, %s16, %s14
  $region1: #{layer_norm_lstm_cell.1} parent=0
    #allocation2 [shape = 'u8[8192]{0}', space=vmem, size = 0x2000, scoped, tag = 'input window, operand 0, single buffered']
    #allocation3 [shape = 's32[1]{0}', space=sflag, size = 0x4, scoped, tag = 'scoped memory for layer_norm_lstm_cell.1']
    #allocation4 [shape = 's32[1]{0}', space=sflag, size = 0x4, scoped, tag = 'scoped memory for layer_norm_lstm_cell.1']
    #allocation5 [shape = 'u8[8192]{0}', space=vmem, size = 0x2000, scoped, tag = 'input window, operand 1, single buffered']
    #allocation6 [shape = 's32[1]{0}', space=sflag, size = 0x4, scoped, tag = 'scoped memory for layer_norm_lstm_cell.1']
    #allocation7 [shape = 'u8[8192]{0}', space=vmem, size = 0x2000, scoped, tag = 'input window, operand 2, single buffered']
    #allocation8 [shape = 'u8[8192]{0}', space=vmem, size = 0x2000, scoped, tag = 'input window, operand 4, single buffered']
    #allocation9 [shape = 's32[1]{0}', space=sflag, size = 0x4, scoped, tag = 'scoped memory for layer_norm_lstm_cell.1']
    #allocation10 [shape = 'u8[512]{0}', space=vmem, size = 0x400, scoped, tag = 'input window, operand 7, single buffered']
    #allocation11 [shape = 'u8[512]{0}', space=vmem, size = 0x400, scoped, tag = 'input window, operand 8, single buffered']
    #allocation12 [shape = 's32[1]{0}', space=sflag, size = 0x4, scoped, tag = 'scoped memory for layer_norm_lstm_cell.1']
    #allocation13 [shape = 'u8[512]{0}', space=vmem, size = 0x400, scoped, tag = 'input window, operand 9, single buffered']
    #allocation14 [shape = 'u8[512]{0}', space=vmem, size = 0x400, scoped, tag = 'input window, operand 10, single buffered']
    #allocation15 [shape = 's32[1]{0}', space=sflag, size = 0x4, scoped, tag = 'scoped memory for layer_norm_lstm_cell.1']
    #allocation16 [shape = 'u8[8192]{0}', space=vmem, size = 0x2000, scoped, tag = 'output window, operand 1, single buffered']
    %18 = vsyncpa [#allocation3], 0
    %19 = vsyncpa [#allocation6], 0
    %20 = vsyncpa [#allocation9], 0
    %21 = vsyncpa [#allocation12], 0
    %22 = vsyncpa [#allocation15], 0
    %23 = vsyncpa [#allocation4], 0
    // Predicated region
    $region2: #{layer_norm_lstm_cell.1} parent=1 // pred_check
      _
    $region3: #{layer_norm_lstm_cell.1} parent=1 // pred_check_branch
      %25 = sbr.rel (0) target = $region5
    $region4: #{layer_norm_lstm_cell.1} parent=1 // pred_region
      %s27 = ssub.s32 256, 256
      %28 = vsyncadd [#allocation3], %s27
      %s29 = sshll.u32 [#allocation2], 4
      %s30 = int_to_ptr.vmem [resolvable:$true] %s29
      %35 = dma.hbm_to_vmem [thread:$0]  %s0, 256, %s30, [#allocation3], 128, 128, 8
    $region5: #{layer_norm_lstm_cell.1} parent=1 // pred_fallthru
      _
    // Predicated region
    $region6: #{layer_norm_lstm_cell.1} parent=1 // pred_check
      _
    $region7: #{layer_norm_lstm_cell.1} parent=1 // pred_check_branch
      %37 = sbr.rel (0) target = $region9
    $region8: #{layer_norm_lstm_cell.1} parent=1 // pred_region
      %s39 = ssub.s32 256, 256
      %40 = vsyncadd [#allocation6], %s39
      %s41 = sshll.u32 [#allocation5], 4
      %s42 = int_to_ptr.vmem [resolvable:$true] %s41
      %47 = dma.hbm_to_vmem [thread:$0]  %s1, 256, %s42, [#allocation6], 128, 128, 8
    $region9: #{layer_norm_lstm_cell.1} parent=1 // pred_fallthru
      _
    // Predicated region
    $region10: #{layer_norm_lstm_cell.1} parent=1 // pred_check
      _
    $region11: #{layer_norm_lstm_cell.1} parent=1 // pred_check_branch
      %49 = sbr.rel (0) target = $region13
    $region12: #{layer_norm_lstm_cell.1} parent=1 // pred_region
      %s51 = ssub.s32 256, 256
      %52 = vsyncadd [#allocation6], %s51
      %s53 = sshll.u32 [#allocation7], 4
      %s54 = int_to_ptr.vmem [resolvable:$true] %s53
      %59 = dma.hbm_to_vmem [thread:$0]  %s2, 256, %s54, [#allocation6], 128, 128, 8
    $region13: #{layer_norm_lstm_cell.1} parent=1 // pred_fallthru
      _
    // Predicated region
    $region14: #{layer_norm_lstm_cell.1} parent=1 // pred_check
      _
    $region15: #{layer_norm_lstm_cell.1} parent=1 // pred_check_branch
      %61 = sbr.rel (0) target = $region17
    $region16: #{layer_norm_lstm_cell.1} parent=1 // pred_region
      _
    $region17: #{layer_norm_lstm_cell.1} parent=1 // pred_fallthru
      _
    // Predicated region
    $region18: #{layer_norm_lstm_cell.1} parent=1 // pred_check
      _
    $region19: #{layer_norm_lstm_cell.1} parent=1 // pred_check_branch
      %63 = sbr.rel (0) target = $region21
    $region20: #{layer_norm_lstm_cell.1} parent=1 // pred_region
      %s65 = ssub.s32 256, 256
      %66 = vsyncadd [#allocation9], %s65
      %s67 = sshll.u32 [#allocation8], 4
      %s68 = int_to_ptr.vmem [resolvable:$true] %s67
      %73 = dma.hbm_to_vmem [thread:$0]  %s4, 256, %s68, [#allocation9], 64, 64, 4
    $region21: #{layer_norm_lstm_cell.1} parent=1 // pred_fallthru
      _
    // Predicated region
    $region22: #{layer_norm_lstm_cell.1} parent=1 // pred_check
      _
    $region23: #{layer_norm_lstm_cell.1} parent=1 // pred_check_branch
      %75 = sbr.rel (0) target = $region25
    $region24: #{layer_norm_lstm_cell.1} parent=1 // pred_region
      _
    $region25: #{layer_norm_lstm_cell.1} parent=1 // pred_fallthru
      _
    // Predicated region
    $region26: #{layer_norm_lstm_cell.1} parent=1 // pred_check
      _
    $region27: #{layer_norm_lstm_cell.1} parent=1 // pred_check_branch
      %77 = sbr.rel (0) target = $region29
    $region28: #{layer_norm_lstm_cell.1} parent=1 // pred_region
      _
    $region29: #{layer_norm_lstm_cell.1} parent=1 // pred_fallthru
      _
    // Predicated region
    $region30: #{layer_norm_lstm_cell.1} parent=1 // pred_check
      _
    $region31: #{layer_norm_lstm_cell.1} parent=1 // pred_check_branch
      %79 = sbr.rel (0) target = $region33
    $region32: #{layer_norm_lstm_cell.1} parent=1 // pred_region
      %s81 = ssub.s32 16, 16
      %82 = vsyncadd [#allocation9], %s81
      %s84 = sshll.u32 [#allocation10], 4
      %s85 = int_to_ptr.vmem [resolvable:$true] %s84
      %87 = dma.hbm_to_vmem [thread:$0]  %s7, 16, %s85, [#allocation9]
    $region33: #{layer_norm_lstm_cell.1} parent=1 // pred_fallthru
      _
    // Predicated region
    $region34: #{layer_norm_lstm_cell.1} parent=1 // pred_check
      _
    $region35: #{layer_norm_lstm_cell.1} parent=1 // pred_check_branch
      %89 = sbr.rel (0) target = $region37
    $region36: #{layer_norm_lstm_cell.1} parent=1 // pred_region
      %s91 = ssub.s32 16, 16
      %92 = vsyncadd [#allocation12], %s91
      %s94 = sshll.u32 [#allocation11], 4
      %s95 = int_to_ptr.vmem [resolvable:$true] %s94
      %97 = dma.hbm_to_vmem [thread:$0]  %s8, 16, %s95, [#allocation12]
    $region37: #{layer_norm_lstm_cell.1} parent=1 // pred_fallthru
      _
    // Predicated region
    $region38: #{layer_norm_lstm_cell.1} parent=1 // pred_check
      _
    $region39: #{layer_norm_lstm_cell.1} parent=1 // pred_check_branch
      %99 = sbr.rel (0) target = $region41
    $region40: #{layer_norm_lstm_cell.1} parent=1 // pred_region
      %s101 = ssub.s32 16, 16
      %102 = vsyncadd [#allocation12], %s101
      %s104 = sshll.u32 [#allocation13], 4
      %s105 = int_to_ptr.vmem [resolvable:$true] %s104
      %107 = dma.hbm_to_vmem [thread:$0]  %s9, 16, %s105, [#allocation12]
    $region41: #{layer_norm_lstm_cell.1} parent=1 // pred_fallthru
      _
    // Predicated region
    $region42: #{layer_norm_lstm_cell.1} parent=1 // pred_check
      _
    $region43: #{layer_norm_lstm_cell.1} parent=1 // pred_check_branch
      %109 = sbr.rel (0) target = $region45
    $region44: #{layer_norm_lstm_cell.1} parent=1 // pred_region
      %s111 = ssub.s32 16, 16
      %112 = vsyncadd [#allocation15], %s111
      %s114 = sshll.u32 [#allocation14], 4
      %s115 = int_to_ptr.vmem [resolvable:$true] %s114
      %117 = dma.hbm_to_vmem [thread:$0]  %s10, 16, %s115, [#allocation15]
    $region45: #{layer_norm_lstm_cell.1} parent=1 // pred_fallthru
      _
    // Predicated region
    $region46: #{layer_norm_lstm_cell.1} parent=1 // pred_check
      _
    $region47: #{layer_norm_lstm_cell.1} parent=1 // pred_check_branch
      %119 = sbr.rel (0) target = $region49
    $region48: #{layer_norm_lstm_cell.1} parent=1 // pred_region
      %120 = dma.done [#allocation3], 256
    $region49: #{layer_norm_lstm_cell.1} parent=1 // pred_fallthru
      _
    // Predicated region
    $region50: #{layer_norm_lstm_cell.1} parent=1 // pred_check
      _
    $region51: #{layer_norm_lstm_cell.1} parent=1 // pred_check_branch
      %122 = sbr.rel (0) target = $region53
    $region52: #{layer_norm_lstm_cell.1} parent=1 // pred_region
      %123 = dma.done [#allocation6], 256
    $region53: #{layer_norm_lstm_cell.1} parent=1 // pred_fallthru
      _
    // Predicated region
    $region54: #{layer_norm_lstm_cell.1} parent=1 // pred_check
      _
    $region55: #{layer_norm_lstm_cell.1} parent=1 // pred_check_branch
      %125 = sbr.rel (0) target = $region57
    $region56: #{layer_norm_lstm_cell.1} parent=1 // pred_region
      %126 = dma.done [#allocation6], 256
    $region57: #{layer_norm_lstm_cell.1} parent=1 // pred_fallthru
      _
    // Predicated region
    $region58: #{layer_norm_lstm_cell.1} parent=1 // pred_check
      _
    $region59: #{layer_norm_lstm_cell.1} parent=1 // pred_check_branch
      %128 = sbr.rel (0) target = $region61
    $region60: #{layer_norm_lstm_cell.1} parent=1 // pred_region
      %129 = dma.done [#allocation9], 256
    $region61: #{layer_norm_lstm_cell.1} parent=1 // pred_fallthru
      _
    // Predicated region
    $region62: #{layer_norm_lstm_cell.1} parent=1 // pred_check
      _
    $region63: #{layer_norm_lstm_cell.1} parent=1 // pred_check_branch
      %131 = sbr.rel (0) target = $region65
    $region64: #{layer_norm_lstm_cell.1} parent=1 // pred_region
      %132 = dma.done [#allocation9], 16
    $region65: #{layer_norm_lstm_cell.1} parent=1 // pred_fallthru
      _
    // Predicated region
    $region66: #{layer_norm_lstm_cell.1} parent=1 // pred_check
      _
    $region67: #{layer_norm_lstm_cell.1} parent=1 // pred_check_branch
      %134 = sbr.rel (0) target = $region69
    $region68: #{layer_norm_lstm_cell.1} parent=1 // pred_region
      %135 = dma.done [#allocation12], 16
    $region69: #{layer_norm_lstm_cell.1} parent=1 // pred_fallthru
      _
    // Predicated region
    $region70: #{layer_norm_lstm_cell.1} parent=1 // pred_check
      _
    $region71: #{layer_norm_lstm_cell.1} parent=1 // pred_check_branch
      %137 = sbr.rel (0) target = $region73
    $region72: #{layer_norm_lstm_cell.1} parent=1 // pred_region
      %138 = dma.done [#allocation12], 16
    $region73: #{layer_norm_lstm_cell.1} parent=1 // pred_fallthru
      _
    // Predicated region
    $region74: #{layer_norm_lstm_cell.1} parent=1 // pred_check
      _
    $region75: #{layer_norm_lstm_cell.1} parent=1 // pred_check_branch
      %140 = sbr.rel (0) target = $region77
    $region76: #{layer_norm_lstm_cell.1} parent=1 // pred_region
      %141 = dma.done [#allocation15], 16
    $region77: #{layer_norm_lstm_cell.1} parent=1 // pred_fallthru
      _
    %v143 = vld [vmem:[#allocation2] sm:$0xff]
    %v144 = vld [vmem:[#allocation2 + $0x8] sm:$0xff]
    %v145 = vpack.c.bf16 %v144, %v143
    %v146 = vld [vmem:[#allocation5] sm:$0xff]
    %v147 = vld [vmem:[#allocation5 + $0x8] sm:$0xff]
    %v148 = vpack.c.bf16 %v147, %v146
    %v149 = vld [vmem:[#allocation7] sm:$0xff]
    %v150 = vld [vmem:[#allocation7 + $0x8] sm:$0xff]
    %v151 = vld [vmem:[%s3] sm:$0xf]
    %v152 = vld [vmem:[%s3 + $0x4] sm:$0xf]
    %v153 = vld [vmem:[%s3 + $0x8] sm:$0xf]
    %v154 = vld [vmem:[%s3 + $0xc] sm:$0xf]
    %v159 = vunpack.c.l.b16 %v151
    %v160 = vunpack.c.l.b16 %v152
    %v161 = vunpack.c.l.b16 %v153
    %v162 = vunpack.c.l.b16 %v154
    %v163 = vpack.c.b16 %v160, %v159
    %v164 = vpack.c.b16 %v162, %v161
    %vm167 = vcmask 261120
    %v169 = vsel %vm167, %v145, 0
    %171 = vmatprep.subr.bf16.mxu0 0
    %172 = vmatpush1.bf16.msra.mxu0 0
    %173 = vmatprep.subr.bf16.mxu0 0
    %174 = vmatpush1.bf16.msra.mxu0 0
    %175 = vmatprep.subr.bf16.mxu0 0
    %176 = vmatpush1.bf16.msra.mxu0 0
    %177 = vmatprep.subr.bf16.mxu0 0
    %178 = vmatpush1.bf16.msra.mxu0 0
    %179 = vmatprep.subr.bf16.mxu0 0
    %180 = vmatpush1.bf16.msra.mxu0 0
    %181 = vmatprep.subr.bf16.mxu0 0
    %182 = vmatpush1.bf16.msra.mxu0 0
    %183 = vmatprep.subr.bf16.mxu0 0
    %184 = vmatpush1.bf16.msra.mxu0 %v164
    %185 = vmatprep.subr.bf16.mxu0 0
    %186 = vmatpush1.bf16.msra.mxu0 %v163
    %187 = vmatprep.subr.bf16.mxu0 0
    %188 = vmatpush2.bf16.msra.mxu0 0
    %189 = vmatprep.subr.bf16.mxu0 0
    %190 = vmatpush2.bf16.msra.mxu0 0
    %191 = vmatprep.subr.bf16.mxu0 0
    %192 = vmatpush2.bf16.msra.mxu0 0
    %193 = vmatprep.subr.bf16.mxu0 0
    %194 = vmatpush2.bf16.msra.mxu0 0
    %195 = vmatprep.subr.bf16.mxu0 0
    %196 = vmatpush2.bf16.msra.mxu0 0
    %197 = vmatprep.subr.bf16.mxu0 0
    %198 = vmatpush2.bf16.msra.mxu0 0
    %199 = vmatprep.subr.bf16.mxu0 0
    %200 = vmatpush2.bf16.msra.mxu0 0
    %201 = vmatprep.subr.bf16.mxu0 0
    %202 = vmatpush2.bf16.msra.mxu0 0
    %203 = vmatprep.mubr.bf16.mxu0 0
    %204 = vmatmul.mubr.bf16.gmra.mxu0 %v169
    %v205 = vpop.f32.mrf.mxu0
    %v206 = vadd.f32 0.0, %v205
    %v207 = vpop.f32.mrf.mxu0
    %v208 = vpop.f32.mrf.mxu0
    %v209 = vadd.f32 0.0, %v208
    %v210 = vpop.f32.mrf.mxu0
    %211 = vdwg.mxu0
    %v212 = vld [vmem:[%s5] sm:$0x1]
    %v213 = vld [vmem:[%s6] sm:$0x1]
    %214 = vadd.xlane.f32.xlu0 %v206
    %v215 = vpop.xlane.xlu0 %214
    %216 = vadd.xlane.f32.xlu0 %v209
    %v217 = vpop.xlane.xlu0 %216
    %v218 = vrcp.pop 128.0
    %v219 = vmul.f32 %v215, %v218
    %v220 = vmul.f32 %v217, %v218
    %v221 = vsub.f32 %v206, %v219
    %v222 = vsub.f32 %v209, %v220
    %v223 = vmul.f32 %v221, %v221
    %v224 = vmul.f32 %v222, %v222
    %225 = vadd.xlane.f32.xlu0 %v223
    %v226 = vpop.xlane.xlu0 %225
    %227 = vadd.xlane.f32.xlu0 %v224
    %v228 = vpop.xlane.xlu0 %227
    %v229 = vmul.f32 %v226, %v218
    %v230 = vmul.f32 %v228, %v218
    %v231 = vadd.f32 %v229, 1e-05
    %v232 = vadd.f32 %v230, 1e-05
    %v233 = vrsqrt.pop %v231
    %v234 = vrsqrt.pop %v232
    %v235 = vmul.f32 %v221, %v233
    %v236 = vmul.f32 %v222, %v234
    %v238 = vlaneseq
    %v239 = vshrl.u32 %v238, 7
    %v240 = vsub.s32 0, %v239
    %v241 = vrot.slane %v212, %v240
    %v243 = vmul.f32 %v235, %v241
    %v244 = vmul.f32 %v236, %v241
    %v246 = vlaneseq
    %v247 = vshrl.u32 %v246, 7
    %v248 = vsub.s32 0, %v247
    %v249 = vrot.slane %v213, %v248
    %v251 = vadd.f32 %v243, %v249
    %v252 = vadd.f32 %v244, %v249
    %v253 = vld [vmem:[#allocation8] sm:$0xf]
    %v254 = vld [vmem:[#allocation8 + $0x4] sm:$0xf]
    %v255 = vld [vmem:[#allocation8 + $0x8] sm:$0xf]
    %v256 = vld [vmem:[#allocation8 + $0xc] sm:$0xf]
    %v261 = vunpack.c.l.b16 %v253
    %v262 = vunpack.c.l.b16 %v254
    %v263 = vunpack.c.l.b16 %v255
    %v264 = vunpack.c.l.b16 %v256
    %v265 = vpack.c.b16 %v262, %v261
    %v266 = vpack.c.b16 %v264, %v263
    %v270 = vsel %vm167, %v148, 0
    %272 = vmatprep.subr.bf16.mxu0 0
    %273 = vmatpush1.bf16.msra.mxu0 0
    %274 = vmatprep.subr.bf16.mxu0 0
    %275 = vmatpush1.bf16.msra.mxu0 0
    %276 = vmatprep.subr.bf16.mxu0 0
    %277 = vmatpush1.bf16.msra.mxu0 0
    %278 = vmatprep.subr.bf16.mxu0 0
    %279 = vmatpush1.bf16.msra.mxu0 0
    %280 = vmatprep.subr.bf16.mxu0 0
    %281 = vmatpush1.bf16.msra.mxu0 0
    %282 = vmatprep.subr.bf16.mxu0 0
    %283 = vmatpush1.bf16.msra.mxu0 0
    %284 = vmatprep.subr.bf16.mxu0 0
    %285 = vmatpush1.bf16.msra.mxu0 %v266
    %286 = vmatprep.subr.bf16.mxu0 0
    %287 = vmatpush1.bf16.msra.mxu0 %v265
    %288 = vmatprep.subr.bf16.mxu0 0
    %289 = vmatpush2.bf16.msra.mxu0 0
    %290 = vmatprep.subr.bf16.mxu0 0
    %291 = vmatpush2.bf16.msra.mxu0 0
    %292 = vmatprep.subr.bf16.mxu0 0
    %293 = vmatpush2.bf16.msra.mxu0 0
    %294 = vmatprep.subr.bf16.mxu0 0
    %295 = vmatpush2.bf16.msra.mxu0 0
    %296 = vmatprep.subr.bf16.mxu0 0
    %297 = vmatpush2.bf16.msra.mxu0 0
    %298 = vmatprep.subr.bf16.mxu0 0
    %299 = vmatpush2.bf16.msra.mxu0 0
    %300 = vmatprep.subr.bf16.mxu0 0
    %301 = vmatpush2.bf16.msra.mxu0 0
    %302 = vmatprep.subr.bf16.mxu0 0
    %303 = vmatpush2.bf16.msra.mxu0 0
    %304 = vmatprep.mubr.bf16.mxu0 0
    %305 = vmatmul.mubr.bf16.gmra.mxu0 %v270
    %v306 = vpop.f32.mrf.mxu0
    %v307 = vadd.f32 0.0, %v306
    %v308 = vpop.f32.mrf.mxu0
    %v309 = vpop.f32.mrf.mxu0
    %v310 = vadd.f32 0.0, %v309
    %v311 = vpop.f32.mrf.mxu0
    %312 = vdwg.mxu0
    %v313 = vld [vmem:[#allocation10] sm:$0x1]
    %v314 = vld [vmem:[#allocation11] sm:$0x1]
    %315 = vadd.xlane.f32.xlu0 %v307
    %v316 = vpop.xlane.xlu0 %315
    %317 = vadd.xlane.f32.xlu0 %v310
    %v318 = vpop.xlane.xlu0 %317
    %v319 = vmul.f32 %v316, %v218
    %v320 = vmul.f32 %v318, %v218
    %v321 = vsub.f32 %v307, %v319
    %v322 = vsub.f32 %v310, %v320
    %v323 = vmul.f32 %v321, %v321
    %v324 = vmul.f32 %v322, %v322
    %325 = vadd.xlane.f32.xlu0 %v323
    %v326 = vpop.xlane.xlu0 %325
    %327 = vadd.xlane.f32.xlu0 %v324
    %v328 = vpop.xlane.xlu0 %327
    %v329 = vmul.f32 %v326, %v218
    %v330 = vmul.f32 %v328, %v218
    %v331 = vadd.f32 %v329, 1e-05
    %v332 = vadd.f32 %v330, 1e-05
    %v333 = vrsqrt.pop %v331
    %v334 = vrsqrt.pop %v332
    %v335 = vmul.f32 %v321, %v333
    %v336 = vmul.f32 %v322, %v334
    %v338 = vlaneseq
    %v339 = vshrl.u32 %v338, 7
    %v340 = vsub.s32 0, %v339
    %v341 = vrot.slane %v313, %v340
    %v343 = vmul.f32 %v335, %v341
    %v344 = vmul.f32 %v336, %v341
    %v346 = vlaneseq
    %v347 = vshrl.u32 %v346, 7
    %v348 = vsub.s32 0, %v347
    %v349 = vrot.slane %v314, %v348
    %v351 = vadd.f32 %v343, %v349
    %v352 = vadd.f32 %v344, %v349
    %v353 = vadd.f32 %v251, %v351
    %v354 = vadd.f32 %v252, %v352
    %v355 = vld [vmem:[#allocation13] sm:$0x1]
    %v356 = vld [vmem:[#allocation14] sm:$0x1]
    %v357 = vxor.u32 %v353, 2147483648
    %v358 = vxor.u32 %v354, 2147483648
    %v359 = vmul.f32 %v357, 1.442695
    %v360 = vpow.pop %v359
    %v361 = vmul.f32 %v358, 1.442695
    %v362 = vpow.pop %v361
    %v363 = vadd.f32 %v360, 1.0
    %v364 = vadd.f32 %v362, 1.0
    %v365 = vrcp.pop %v363
    %v366 = vmul.f32 1.0, %v365
    %v367 = vrcp.pop %v364
    %v368 = vmul.f32 1.0, %v367
    %v369 = vtanh.pop %v353
    %v370 = vtanh.pop %v354
    %373 = vrot.lane.b32.xlu0 %v149, 32
    %v374 = vpop.permute.xlu0 %373
    %375 = vrot.lane.b32.xlu0 %v150, 32
    %v376 = vpop.permute.xlu0 %375
    %v379 = vmul.f32 %v366, %v374
    %v380 = vmul.f32 %v368, %v376
    %383 = vrot.lane.b32.xlu0 %v369, 32
    %v384 = vpop.permute.xlu0 %383
    %385 = vrot.lane.b32.xlu0 %v370, 32
    %v386 = vpop.permute.xlu0 %385
    %v389 = vmul.f32 %v366, %v384
    %v390 = vmul.f32 %v368, %v386
    %393 = vrot.lane.b32.xlu0 %v389, 32
    %v394 = vpop.permute.xlu0 %393
    %395 = vrot.lane.b32.xlu0 %v390, 32
    %v396 = vpop.permute.xlu0 %395
    %v399 = vadd.f32 %v379, %v394
    %v400 = vadd.f32 %v380, %v396
    %403 = vrot.lane.b32.xlu0 %v399, 96
    %v404 = vpop.permute.xlu0 %403
    %405 = vrot.lane.b32.xlu0 %v400, 96
    %v406 = vpop.permute.xlu0 %405
    %v409 = vsel %vm167, %v404, 0.0
    %410 = vadd.xlane.f32.xlu0 %v409
    %v411 = vpop.xlane.xlu0 %410
    %v412 = vsel %vm167, %v406, 0.0
    %413 = vadd.xlane.f32.xlu0 %v412
    %v414 = vpop.xlane.xlu0 %413
    %v415 = vrcp.pop 32.0
    %v416 = vmul.f32 %v411, %v415
    %v417 = vmul.f32 %v414, %v415
    %v418 = vsub.f32 %v399, %v416
    %v419 = vsub.f32 %v400, %v417
    %v420 = vmul.f32 %v418, %v418
    %v421 = vmul.f32 %v419, %v419
    %424 = vrot.lane.b32.xlu0 %v420, 96
    %v425 = vpop.permute.xlu0 %424
    %426 = vrot.lane.b32.xlu0 %v421, 96
    %v427 = vpop.permute.xlu0 %426
    %v430 = vsel %vm167, %v425, 0.0
    %431 = vadd.xlane.f32.xlu0 %v430
    %v432 = vpop.xlane.xlu0 %431
    %v433 = vsel %vm167, %v427, 0.0
    %434 = vadd.xlane.f32.xlu0 %v433
    %v435 = vpop.xlane.xlu0 %434
    %v436 = vmul.f32 %v432, %v415
    %v437 = vmul.f32 %v435, %v415
    %v438 = vadd.f32 %v436, 1e-05
    %v439 = vadd.f32 %v437, 1e-05
    %v440 = vrsqrt.pop %v438
    %v441 = vrsqrt.pop %v439
    %v442 = vmul.f32 %v418, %v440
    %v443 = vmul.f32 %v419, %v441
    %v445 = vlaneseq
    %v446 = vshrl.u32 %v445, 7
    %v447 = vsub.s32 0, %v446
    %v448 = vrot.slane %v355, %v447
    %449 = vrot.lane.b32.xlu0 %v448, 32
    %v450 = vpop.permute.xlu0 %449
    %v452 = vmul.f32 %v442, %v450
    %v453 = vmul.f32 %v443, %v450
    %v455 = vlaneseq
    %v456 = vshrl.u32 %v455, 7
    %v457 = vsub.s32 0, %v456
    %v458 = vrot.slane %v356, %v457
    %459 = vrot.lane.b32.xlu0 %v458, 32
    %v460 = vpop.permute.xlu0 %459
    %v462 = vadd.f32 %v452, %v460
    %v463 = vadd.f32 %v453, %v460
    %v464 = vtanh.pop %v462
    %v465 = vtanh.pop %v463
    %468 = vrot.lane.b32.xlu0 %v464, 32
    %v469 = vpop.permute.xlu0 %468
    %470 = vrot.lane.b32.xlu0 %v465, 32
    %v471 = vpop.permute.xlu0 %470
    %v474 = vmul.f32 %v366, %v469
    %v475 = vmul.f32 %v368, %v471
    %478 = vrot.lane.b32.xlu0 %v474, 64
    %v479 = vpop.permute.xlu0 %478
    %480 = vrot.lane.b32.xlu0 %v475, 64
    %v481 = vpop.permute.xlu0 %480
    %484 = vst.msk [vmem:[%s11] sm:$0xff] %vm167, %v479
    %485 = vst.msk [vmem:[%s11 + $0x8] sm:$0xff] %vm167, %v481
    %488 = vrot.lane.b32.xlu0 %v462, 96
    %v489 = vpop.permute.xlu0 %488
    %490 = vrot.lane.b32.xlu0 %v463, 96
    %v491 = vpop.permute.xlu0 %490
    %494 = vst.msk [vmem:[#allocation16] sm:$0xff] %vm167, %v489
    %495 = vst.msk [vmem:[#allocation16 + $0x8] sm:$0xff] %vm167, %v491
    // Predicated region
    $region78: #{layer_norm_lstm_cell.1} parent=1 // pred_check
      _
    $region79: #{layer_norm_lstm_cell.1} parent=1 // pred_check_branch
      %497 = sbr.rel (0) target = $region81
    $region80: #{layer_norm_lstm_cell.1} parent=1 // pred_region
      _
    $region81: #{layer_norm_lstm_cell.1} parent=1 // pred_fallthru
      _
    // Predicated region
    $region82: #{layer_norm_lstm_cell.1} parent=1 // pred_check
      _
    $region83: #{layer_norm_lstm_cell.1} parent=1 // pred_check_branch
      %499 = sbr.rel (0) target = $region85
    $region84: #{layer_norm_lstm_cell.1} parent=1 // pred_region
      %s501 = ssub.s32 256, 256
      %502 = vsyncadd [#allocation4], %s501
      %s503 = sshll.u32 [#allocation16], 4
      %s504 = int_to_ptr.vmem [resolvable:$true] %s503
      %509 = dma.vmem_to_hbm [thread:$0]  %s504, 256, %s12, [#allocation4], 128, 128, 8
    $region85: #{layer_norm_lstm_cell.1} parent=1 // pred_fallthru
      _
    // Predicated region
    $region86: #{layer_norm_lstm_cell.1} parent=1 // pred_check
      _
    $region87: #{layer_norm_lstm_cell.1} parent=1 // pred_check_branch
      %511 = sbr.rel (0) target = $region89
    $region88: #{layer_norm_lstm_cell.1} parent=1 // pred_region
      _
    $region89: #{layer_norm_lstm_cell.1} parent=1 // pred_fallthru
      _
    // Predicated region
    $region90: #{layer_norm_lstm_cell.1} parent=1 // pred_check
      _
    $region91: #{layer_norm_lstm_cell.1} parent=1 // pred_check_branch
      %513 = sbr.rel (0) target = $region93
    $region92: #{layer_norm_lstm_cell.1} parent=1 // pred_region
      %514 = dma.done [#allocation4], 256
    $region93: #{layer_norm_lstm_cell.1} parent=1 // pred_fallthru
      _
    %515 = vsyncpa [#allocation3], 1
    %516 = vsyncpa [#allocation6], 1
    %517 = vsyncpa [#allocation9], 1
    %518 = vsyncpa [#allocation12], 1
    %519 = vsyncpa [#allocation15], 1
    %520 = vsyncpa [#allocation4], 1

</llo_original>
